<compile_context>
chip_gen: v7x
topology: tpu7x:2x2x1
jax: 0.10.0
libtpu: 0.0.40
codegen_flags: <defaults>
</compile_context>

<pallas_src>
import functools

import jax
import jax.numpy as jnp
from jax.experimental import pallas as pl
from jax.experimental.pallas import tpu as pltpu

SUBLANE = 8            # f32 sublane count
_GRIDLESS_MAX_ROWS = 1024   # below this, a single grid step never helps


def mlp_kernel(x_ref, w1_ref, b1_ref, w2_ref, b2_ref, o_ref):
    # Two MXU matmuls + VPU bias/ReLU, fused so no intermediate round-trips VMEM/HBM.
    h = jnp.maximum(
        jnp.dot(x_ref[...], w1_ref[...], preferred_element_type=jnp.float32)
        + b1_ref[...],
        0.0,
    )
    o_ref[...] = (
        jnp.dot(h, w2_ref[...], preferred_element_type=jnp.float32) + b2_ref[...]
    ).astype(o_ref.dtype)


def _round_up(n, m):
    return ((n + m - 1) // m) * m


@functools.partial(jax.jit, static_argnames=("batch_tile",))
def simple_model_forward(x, w1, b1, w2, b2, *, batch_tile=4096):
    """y = relu(x @ w1 + b1) @ w2 + b2  (weights stored (in, out), biases 1-D)."""
    B, D_in = x.shape
    D_hid = w1.shape[1]
    D_out = w2.shape[1]

    b1r = b1.reshape(1, D_hid)
    b2r = b2.reshape(1, D_out)

    b8 = _round_up(B, SUBLANE)

    if b8 <= min(_GRIDLESS_MAX_ROWS, batch_tile):
        # Small batch: grid-less call, everything in VMEM, no padding / slicing ops.
        return pl.pallas_call(
            mlp_kernel,
            out_shape=jax.ShapeDtypeStruct((B, D_out), x.dtype),
            in_specs=[pl.BlockSpec(memory_space=pltpu.MemorySpace.VMEM)] * 5,
            out_specs=pl.BlockSpec(memory_space=pltpu.MemorySpace.VMEM),
        )(x, w1, b1r, w2, b2r)

    # Large batch: balanced batch tiles, lane dims left at their natural widths
    # (block last-dim == full array dim satisfies the (8,128) rule).
    n_blocks = max(2, pl.cdiv(b8, batch_tile))          # >=2 so v7x's 2 TCs both work
    tb = _round_up(pl.cdiv(b8, n_blocks), SUBLANE)      # balanced tiles, mult. of 8
    bp = n_blocks * tb                                  # bounded row padding (<8*n_blocks)

    xp = jnp.pad(x, ((0, bp - B), (0, 0))) if bp != B else x

    itemsize = jnp.dtype(x.dtype).itemsize
    cost = pl.CostEstimate(
        flops=2 * bp * (D_in * D_hid + D_hid * D_out),
        transcendentals=0,
        bytes_accessed=(bp * D_in + bp * D_out) * itemsize
        + (w1.size + b1.size + w2.size + b2.size) * jnp.dtype(w1.dtype).itemsize,
    )

    out_p = pl.pallas_call(
        mlp_kernel,
        out_shape=jax.ShapeDtypeStruct((bp, D_out), x.dtype),
        grid=(n_blocks,),
        in_specs=[
            pl.BlockSpec((tb, D_in), lambda i: (i, 0)),      # streamed activations
            pl.BlockSpec((D_in, D_hid), lambda i: (0, 0)),   # resident weights
            pl.BlockSpec((1, D_hid), lambda i: (0, 0)),
            pl.BlockSpec((D_hid, D_out), lambda i: (0, 0)),
            pl.BlockSpec((1, D_out), lambda i: (0, 0)),
        ],
        out_specs=pl.BlockSpec((tb, D_out), lambda i: (i, 0)),
        compiler_params=pltpu.CompilerParams(
            dimension_semantics=("parallel",)
        ),
        cost_estimate=cost,
    )(xp, w1, b1r, w2, b2r)

    return out_p[:B] if bp != B else out_p


if __name__ == "__main__":
    key = jax.random.PRNGKey(0)
    k_x, k_w1, k_b1, k_w2, k_b2, k_x2 = jax.random.split(key, 6)

    D_in, D_hid, D_out = 100, 50, 10

    # Parameters (shapes match nn.Linear(100,50) / nn.Linear(50,10), stored (in,out)).
    w1 = jax.random.normal(k_w1, (D_in, D_hid), dtype=jnp.float32) * 0.1
    b1 = jax.random.normal(k_b1, (D_hid,), dtype=jnp.float32) * 0.1
    w2 = jax.random.normal(k_w2, (D_hid, D_out), dtype=jnp.float32) * 0.1
    b2 = jax.random.normal(k_b2, (D_out,), dtype=jnp.float32) * 0.1

    def ref_fwd(x):
        return jnp.maximum(x @ w1 + b1, 0.0) @ w2 + b2

    # 1) Small batch -> grid-less path, zero wrapper padding.
    B_small = 8
    x_small = jax.random.normal(k_x, (B_small, D_in), dtype=jnp.float32)
    out_small = jax.block_until_ready(simple_model_forward(x_small, w1, b1, w2, b2))
    assert out_small.shape == (B_small, D_out)
    assert jnp.allclose(out_small, ref_fwd(x_small), atol=1e-4, rtol=1e-4)

    # 2) Uneven batch, default tile -> still grid-less (B <= 1024), no padding ops.
    B_mid = 300
    x_mid = jax.random.normal(k_x2, (B_mid, D_in), dtype=jnp.float32)
    out_mid = jax.block_until_ready(simple_model_forward(x_mid, w1, b1, w2, b2))
    assert out_mid.shape == (B_mid, D_out)
    assert jnp.allclose(out_mid, ref_fwd(x_mid), atol=1e-4, rtol=1e-4)

    # 3) Force the batch-tiled grid path (balanced tiles: 300 -> 3 blocks of 104 rows).
    out_tiled = jax.block_until_ready(
        simple_model_forward(x_mid, w1, b1, w2, b2, batch_tile=128)
    )
    assert out_tiled.shape == (B_mid, D_out)
    assert jnp.allclose(out_tiled, ref_fwd(x_mid), atol=1e-4, rtol=1e-4)

    print("KERNEL_OK")
</pallas_src>

<mosaic_0001>
module attributes {stable_mosaic.version = 11 : i64} {
  func.func @mlp_kernel(%arg0: memref<8x100xf32, #tpu.memory_space<vmem>>, %arg1: memref<100x50xf32, #tpu.memory_space<vmem>>, %arg2: memref<1x50xf32, #tpu.memory_space<vmem>>, %arg3: memref<50x10xf32, #tpu.memory_space<vmem>>, %arg4: memref<1x10xf32, #tpu.memory_space<vmem>>, %arg5: memref<8x10xf32, #tpu.memory_space<vmem>>) attributes {dimension_semantics = [], scalar_prefetch = 0 : i64, scratch_operands = 0 : i64, tpu.core_type = #tpu.core_type<tc>} {
    %c0 = arith.constant 0 : index
    %c0_0 = arith.constant 0 : index
    %0 = vector.load %arg0[%c0, %c0_0] : memref<8x100xf32, #tpu.memory_space<vmem>>, vector<8x100xf32>
    %c0_1 = arith.constant 0 : index
    %c0_2 = arith.constant 0 : index
    %1 = vector.load %arg1[%c0_1, %c0_2] : memref<100x50xf32, #tpu.memory_space<vmem>>, vector<100x50xf32>
    %cst = arith.constant dense<0.000000e+00> : vector<8x50xf32>
    %2 = tpu.matmul %0, %1, %cst {dimension_numbers = #tpu.dot_dimension_numbers<[1], [0], [0], [1], [0, 0, 1, 1], [], []>} : vector<8x100xf32>, vector<100x50xf32>, vector<8x50xf32> -> vector<8x50xf32>
    %c0_3 = arith.constant 0 : index
    %c0_4 = arith.constant 0 : index
    %3 = vector.load %arg2[%c0_3, %c0_4] : memref<1x50xf32, #tpu.memory_space<vmem>>, vector<1x50xf32>
    %4 = vector.broadcast %3 : vector<1x50xf32> to vector<8x50xf32>
    %5 = arith.addf %2, %4 : vector<8x50xf32>
    %cst_5 = arith.constant 0.000000e+00 : f32
    %6 = vector.broadcast %cst_5 : f32 to vector<8x50xf32>
    %7 = arith.maximumf %5, %6 : vector<8x50xf32>
    %c0_6 = arith.constant 0 : index
    %c0_7 = arith.constant 0 : index
    %8 = vector.load %arg3[%c0_6, %c0_7] : memref<50x10xf32, #tpu.memory_space<vmem>>, vector<50x10xf32>
    %cst_8 = arith.constant dense<0.000000e+00> : vector<8x10xf32>
    %9 = tpu.matmul %7, %8, %cst_8 {dimension_numbers = #tpu.dot_dimension_numbers<[1], [0], [0], [1], [0, 0, 1, 1], [], []>} : vector<8x50xf32>, vector<50x10xf32>, vector<8x10xf32> -> vector<8x10xf32>
    %c0_9 = arith.constant 0 : index
    %c0_10 = arith.constant 0 : index
    %10 = vector.load %arg4[%c0_9, %c0_10] : memref<1x10xf32, #tpu.memory_space<vmem>>, vector<1x10xf32>
    %11 = vector.broadcast %10 : vector<1x10xf32> to vector<8x10xf32>
    %12 = arith.addf %9, %11 : vector<8x10xf32>
    %c0_11 = arith.constant 0 : index
    %c0_12 = arith.constant 0 : index
    %13 = vector.load %arg5[%c0_11, %c0_12] : memref<8x10xf32, #tpu.memory_space<vmem>>, vector<8x10xf32>
    tpu.vector_store %arg5[%c0_11, %c0_12], %12 {strides = array<i32>} : memref<8x10xf32, #tpu.memory_space<vmem>>, vector<8x10xf32>,
    return
  }
}

</mosaic_0001>

<llo_original>
// kernel: simple_model_forward.1
$region0: #{simple_model_forward.1}
  #allocation0 [shape = 'u32[]', space=smem, size = 0x4, offset = 0x4, fixed_abs, tag = 'smem constant byte address 0x4 - core index']
  #allocation1 [shape = 'u32[144,128]{1,0:T(1,128)}', space=vmem, size = 0x12000, scoped, tag = 'internal scratch']
  %s0 = inlined_call_operand.vmem [shape: f32[8,100], index: 0, kind: input, shape index: {}]
  %s1 = inlined_call_operand.vmem [shape: f32[100,50], index: 1, kind: input, shape index: {}]
  %s2 = inlined_call_operand.vmem [shape: f32[1,50], index: 2, kind: input, shape index: {}]
  %s3 = inlined_call_operand.vmem [shape: f32[50,10], index: 3, kind: input, shape index: {}]
  %s4 = inlined_call_operand.vmem [shape: f32[1,10], index: 4, kind: input, shape index: {}]
  %s5 = inlined_call_operand.hbm [shape: f32[8,10], index: 5, kind: output, shape index: {}]
  %s6 = sld [smem:[#allocation0]]
  $region30: #{simple_model_forward.1} parent=0
    _
  %s8 = ssub.s32 1, %s6
  %s9 = scalar_select 0, %s8, %s6
  $region1: #{simple_model_forward.1} parent=0
    #allocation2 [shape = 'u8[4096]{0}', space=vmem, size = 0x1000, scoped, tag = 'output window, operand 0, single buffered']
    #allocation3 [shape = 's32[1]{0}', space=sflag, size = 0x4, scoped, tag = 'scoped memory for simple_model_forward.1']
    %10 = vsyncpa [#allocation3], 0
    // Predicated region
    $region2: #{simple_model_forward.1} parent=1 // pred_check
      _
    $region3: #{simple_model_forward.1} parent=1 // pred_check_branch
      %12 = sbr.rel (0) target = $region5
    $region4: #{simple_model_forward.1} parent=1 // pred_region
      _
    $region5: #{simple_model_forward.1} parent=1 // pred_fallthru
      _
    // Predicated region
    $region6: #{simple_model_forward.1} parent=1 // pred_check
      _
    $region7: #{simple_model_forward.1} parent=1 // pred_check_branch
      %14 = sbr.rel (0) target = $region9
    $region8: #{simple_model_forward.1} parent=1 // pred_region
      _
    $region9: #{simple_model_forward.1} parent=1 // pred_fallthru
      _
    // Predicated region
    $region10: #{simple_model_forward.1} parent=1 // pred_check
      _
    $region11: #{simple_model_forward.1} parent=1 // pred_check_branch
      %16 = sbr.rel (0) target = $region13
    $region12: #{simple_model_forward.1} parent=1 // pred_region
      _
    $region13: #{simple_model_forward.1} parent=1 // pred_fallthru
      _
    // Predicated region
    $region14: #{simple_model_forward.1} parent=1 // pred_check
      _
    $region15: #{simple_model_forward.1} parent=1 // pred_check_branch
      %18 = sbr.rel (0) target = $region17
    $region16: #{simple_model_forward.1} parent=1 // pred_region
      _
    $region17: #{simple_model_forward.1} parent=1 // pred_fallthru
      _
    // Predicated region
    $region18: #{simple_model_forward.1} parent=1 // pred_check
      _
    $region19: #{simple_model_forward.1} parent=1 // pred_check_branch
      %20 = sbr.rel (0) target = $region21
    $region20: #{simple_model_forward.1} parent=1 // pred_region
      _
    $region21: #{simple_model_forward.1} parent=1 // pred_fallthru
      _
    %v21 = vld [vmem:[%s0] sm:$0xff]
    %v22 = vld [vmem:[%s1] sm:$0xff]
    %v23 = vld [vmem:[%s1 + $0x8] sm:$0xff]
    %v24 = vld [vmem:[%s1 + $0x10] sm:$0xff]
    %v25 = vld [vmem:[%s1 + $0x18] sm:$0xff]
    %v26 = vld [vmem:[%s1 + $0x20] sm:$0xff]
    %v27 = vld [vmem:[%s1 + $0x28] sm:$0xff]
    %v28 = vld [vmem:[%s1 + $0x30] sm:$0xff]
    %v29 = vld [vmem:[%s1 + $0x38] sm:$0xff]
    %v30 = vld [vmem:[%s1 + $0x40] sm:$0xff]
    %v31 = vld [vmem:[%s1 + $0x48] sm:$0xff]
    %v32 = vld [vmem:[%s1 + $0x50] sm:$0xff]
    %v33 = vld [vmem:[%s1 + $0x58] sm:$0xff]
    %v34 = vld [vmem:[%s1 + $0x60] sm:$0xf]
    %v35 = vld [vmem:[%s2] sm:$0x1]
    %v37 = vlaneseq
    %v38 = vshrl.u32 %v37, 7
    %v39 = vsub.s32 0, %v38
    %v40 = vrot.slane %v35, %v39
    %vm42 = vcmask 818176
    %v44 = vsel %vm42, %v21, 0
    %vm46 = vcmask 1043456
    %v48 = vsel %vm46, %v34, 0
    %50 = vmatprep.subr.mxu0 0.0
    %51 = vmatpush1.msra.mxu0 %v22
    %52 = vmatprep.subr.mxu0 0.0
    %53 = vmatpush1.msra.mxu0 %v23
    %54 = vmatprep.subr.mxu0 0.0
    %55 = vmatpush1.msra.mxu0 %v24
    %56 = vmatprep.subr.mxu0 0.0
    %57 = vmatpush1.msra.mxu0 %v25
    %58 = vmatprep.subr.mxu0 0.0
    %59 = vmatpush1.msra.mxu0 %v26
    %60 = vmatprep.subr.mxu0 0.0
    %61 = vmatpush1.msra.mxu0 %v27
    %62 = vmatprep.subr.mxu0 0.0
    %63 = vmatpush1.msra.mxu0 %v28
    %64 = vmatprep.subr.mxu0 0.0
    %65 = vmatpush1.msra.mxu0 %v29
    %66 = vmatprep.subr.mxu0 0.0
    %67 = vmatpush1.msra.mxu0 %v30
    %68 = vmatprep.subr.mxu0 0.0
    %69 = vmatpush1.msra.mxu0 %v31
    %70 = vmatprep.subr.mxu0 0.0
    %71 = vmatpush1.msra.mxu0 %v32
    %72 = vmatprep.subr.mxu0 0.0
    %73 = vmatpush1.msra.mxu0 %v33
    %74 = vmatprep.subr.mxu0 0.0
    %75 = vmatpush1.msra.mxu0 %v48
    %76 = vmatprep.subr.mxu0 0.0
    %77 = vmatpush1.msra.mxu0 0.0
    %78 = vmatprep.subr.mxu0 0.0
    %79 = vmatpush1.msra.mxu0 0.0
    %80 = vmatprep.subr.mxu0 0.0
    %81 = vmatpush1.msra.mxu0 0.0
    %82 = vmatprep.subr.mxu0 0.0
    %83 = vmatpush1.msra.mxu0 0.0
    %84 = vmatprep.subr.mxu0 0.0
    %85 = vmatpush1.msra.mxu0 0.0
    %86 = vmatprep.subr.mxu0 0.0
    %87 = vmatpush1.msra.mxu0 0.0
    %88 = vmatprep.subr.mxu0 0.0
    %89 = vmatpush1.msra.mxu0 0.0
    %90 = vmatprep.subr.mxu0 0.0
    %91 = vmatpush1.msra.mxu0 0.0
    %92 = vmatprep.subr.mxu0 0.0
    %93 = vmatpush1.msra.mxu0 0.0
    %94 = vmatprep.subr.mxu0 0.0
    %95 = vmatpush1.msra.mxu0 0.0
    %96 = vmatprep.subr.mxu0 0.0
    %97 = vmatpush1.msra.mxu0 0.0
    %98 = vmatprep.subr.mxu0 0.0
    %99 = vmatpush1.msra.mxu0 0.0
    %100 = vmatprep.subr.mxu0 0.0
    %101 = vmatpush1.msra.mxu0 0.0
    %102 = vmatprep.subr.mxu0 0.0
    %103 = vmatpush1.msra.mxu0 0.0
    %104 = vmatprep.subr.mxu0 0.0
    %105 = vmatpush1.msra.mxu0 0.0
    %106 = vmatprep.subr.mxu0 0.0
    %107 = vmatpush1.msra.mxu0 0.0
    %108 = vmatprep.subr.mxu0 0.0
    %109 = vmatpush1.msra.mxu0 0.0
    %110 = vmatprep.subr.mxu0 0.0
    %111 = vmatpush1.msra.mxu0 0.0
    %112 = vmatprep.subr.mxu0 0.0
    %113 = vmatpush1.msra.mxu0 0.0
    %114 = vmatprep.mubr.f32.mxu0 0.0
    %115 = vmatmul.mubr.f32.gmra.mrb[0].mxu0 %v44
    %v116 = vpop.f32.mrb[0].mxu0
    %v117 = vadd.f32 %v40, %v116
    %v118 = vpop.f32.mrb[0].mxu0
    %119 = vdwg.mxu0
    %v120 = vmax.f32 %v117, 0.0
    %v121 = vld [vmem:[%s3] sm:$0xff]
    %v122 = vld [vmem:[%s3 + $0x8] sm:$0xff]
    %v123 = vld [vmem:[%s3 + $0x10] sm:$0xff]
    %v124 = vld [vmem:[%s3 + $0x18] sm:$0xff]
    %v125 = vld [vmem:[%s3 + $0x20] sm:$0xff]
    %v126 = vld [vmem:[%s3 + $0x28] sm:$0xff]
    %v127 = vld [vmem:[%s3 + $0x30] sm:$0x3]
    %v128 = vld [vmem:[%s4] sm:$0x1]
    %v130 = vlaneseq
    %v131 = vshrl.u32 %v130, 7
    %v132 = vsub.s32 0, %v131
    %v133 = vrot.slane %v128, %v132
    %vm135 = vcmask 408576
    %v137 = vsel %vm135, %v120, 0
    %vm139 = vcmask 1041408
    %v141 = vsel %vm139, %v127, 0
    %143 = vmatprep.subr.mxu0 0.0
    %144 = vmatpush1.msra.mxu0 %v121
    %145 = vmatprep.subr.mxu0 0.0
    %146 = vmatpush1.msra.mxu0 %v122
    %147 = vmatprep.subr.mxu0 0.0
    %148 = vmatpush1.msra.mxu0 %v123
    %149 = vmatprep.subr.mxu0 0.0
    %150 = vmatpush1.msra.mxu0 %v124
    %151 = vmatprep.subr.mxu0 0.0
    %152 = vmatpush1.msra.mxu0 %v125
    %153 = vmatprep.subr.mxu0 0.0
    %154 = vmatpush1.msra.mxu0 %v126
    %155 = vmatprep.subr.mxu0 0.0
    %156 = vmatpush1.msra.mxu0 %v141
    %157 = vmatprep.subr.mxu0 0.0
    %158 = vmatpush1.msra.mxu0 0.0
    %159 = vmatprep.subr.mxu0 0.0
    %160 = vmatpush1.msra.mxu0 0.0
    %161 = vmatprep.subr.mxu0 0.0
    %162 = vmatpush1.msra.mxu0 0.0
    %163 = vmatprep.subr.mxu0 0.0
    %164 = vmatpush1.msra.mxu0 0.0
    %165 = vmatprep.subr.mxu0 0.0
    %166 = vmatpush1.msra.mxu0 0.0
    %167 = vmatprep.subr.mxu0 0.0
    %168 = vmatpush1.msra.mxu0 0.0
    %169 = vmatprep.subr.mxu0 0.0
    %170 = vmatpush1.msra.mxu0 0.0
    %171 = vmatprep.subr.mxu0 0.0
    %172 = vmatpush1.msra.mxu0 0.0
    %173 = vmatprep.subr.mxu0 0.0
    %174 = vmatpush1.msra.mxu0 0.0
    %175 = vmatprep.subr.mxu0 0.0
    %176 = vmatpush1.msra.mxu0 0.0
    %177 = vmatprep.subr.mxu0 0.0
    %178 = vmatpush1.msra.mxu0 0.0
    %179 = vmatprep.subr.mxu0 0.0
    %180 = vmatpush1.msra.mxu0 0.0
    %181 = vmatprep.subr.mxu0 0.0
    %182 = vmatpush1.msra.mxu0 0.0
    %183 = vmatprep.subr.mxu0 0.0
    %184 = vmatpush1.msra.mxu0 0.0
    %185 = vmatprep.subr.mxu0 0.0
    %186 = vmatpush1.msra.mxu0 0.0
    %187 = vmatprep.subr.mxu0 0.0
    %188 = vmatpush1.msra.mxu0 0.0
    %189 = vmatprep.subr.mxu0 0.0
    %190 = vmatpush1.msra.mxu0 0.0
    %191 = vmatprep.subr.mxu0 0.0
    %192 = vmatpush1.msra.mxu0 0.0
    %193 = vmatprep.subr.mxu0 0.0
    %194 = vmatpush1.msra.mxu0 0.0
    %195 = vmatprep.subr.mxu0 0.0
    %196 = vmatpush1.msra.mxu0 0.0
    %197 = vmatprep.subr.mxu0 0.0
    %198 = vmatpush1.msra.mxu0 0.0
    %199 = vmatprep.subr.mxu0 0.0
    %200 = vmatpush1.msra.mxu0 0.0
    %201 = vmatprep.subr.mxu0 0.0
    %202 = vmatpush1.msra.mxu0 0.0
    %203 = vmatprep.subr.mxu0 0.0
    %204 = vmatpush1.msra.mxu0 0.0
    %205 = vmatprep.subr.mxu0 0.0
    %206 = vmatpush1.msra.mxu0 0.0
    %207 = vmatprep.mubr.f32.mxu0 0.0
    %208 = vmatmul.mubr.f32.gmra.mrb[0].mxu0 %v137
    %v209 = vpop.f32.mrb[0].mxu0
    %v210 = vadd.f32 %v133, %v209
    %v211 = vpop.f32.mrb[0].mxu0
    %212 = vdwg.mxu0
    %vm213 = vcmask 80896
    %214 = vst.msk [vmem:[#allocation2] sm:$0xff] %vm213, %v210
    // Predicated region
    $region22: #{simple_model_forward.1} parent=1 // pred_check
      _
    $region23: #{simple_model_forward.1} parent=1 // pred_check_branch
      %216 = sbr.rel (0) target = $region25
    $region24: #{simple_model_forward.1} parent=1 // pred_region
      %s218 = ssub.s32 128, 128
      %219 = vsyncadd [#allocation3], %s218
      %s221 = sshll.u32 [#allocation2], 4
      %s222 = int_to_ptr.vmem [resolvable:$true] %s221
      %224 = dma.vmem_to_hbm [thread:$0]  %s222, 128, %s5, [#allocation3]
    $region25: #{simple_model_forward.1} parent=1 // pred_fallthru
      _
    // Predicated region
    $region26: #{simple_model_forward.1} parent=1 // pred_check
      _
    $region27: #{simple_model_forward.1} parent=1 // pred_check_branch
      %226 = sbr.rel (0) target = $region29
    $region28: #{simple_model_forward.1} parent=1 // pred_region
      %227 = dma.done [#allocation3], 128
    $region29: #{simple_model_forward.1} parent=1 // pred_fallthru
      _
    %228 = vsyncpa [#allocation3], 1

</llo_original>
